<compile_context>
chip_gen: v7x
topology: tpu7x:2x2x1
jax: 0.10.0
libtpu: 0.0.40
codegen_flags: <defaults>
</compile_context>

<pallas_src>
import functools

import jax
import jax.numpy as jnp
from jax.experimental import pallas as pl
from jax.experimental.pallas import tpu as pltpu


def _round_up(x, m):
    return (x + m - 1) // m * m


def _disc_kernel(*refs, has_batch):
    """Whole MLP for one tile of rows. Weights stay resident in VMEM.

    MXU operands are cast to the weight compute dtype (bf16 by default) right before
    each dot; accumulation and element-wise math (bias add, LeakyReLU) stay in f32.
    """
    if has_batch:
        (x_ref, b_ref, w0x_ref, w0b_ref, b0_ref,
         w1_ref, b1_ref, wp_ref, bp_ref, o_ref) = refs
    else:
        (x_ref, w0x_ref, b0_ref,
         w1_ref, b1_ref, wp_ref, bp_ref, o_ref) = refs

    neg = jnp.float32(0.2)

    # layer 0: x @ W0_x (cast to compute dtype only here; x is streamed as-is)
    x = x_ref[...].astype(w0x_ref.dtype)
    h = jnp.dot(x, w0x_ref[...], preferred_element_type=jnp.float32)
    h = h + b0_ref[...]

    if has_batch:
        # Build one_hot(b) in-kernel (cheap VPU compare) and fold the batch
        # contribution in via a tiny resident matmul on the MXU.
        rows = b_ref.shape[0]
        nb = w0b_ref.shape[0]                      # n_batches padded to mult. of 8
        iota = jax.lax.broadcasted_iota(jnp.int32, (rows, nb), 1)
        oh = (b_ref[...] == iota).astype(w0b_ref.dtype)
        h = h + jnp.dot(oh, w0b_ref[...], preferred_element_type=jnp.float32)

    h = jnp.where(h >= 0, h, neg * h)

    # layer 1: linear + LeakyReLU(0.2)
    h = jnp.dot(h.astype(w1_ref.dtype), w1_ref[...],
                preferred_element_type=jnp.float32)
    h = h + b1_ref[...]
    h = jnp.where(h >= 0, h, neg * h)

    # prediction head
    y = jnp.dot(h.astype(wp_ref.dtype), wp_ref[...],
                preferred_element_type=jnp.float32)
    y = y + bp_ref[...]

    o_ref[...] = y.astype(o_ref.dtype)


def prepare_params(params, in_features, n_batches, compute_dtype=jnp.bfloat16):
    """One-time re-layout of PyTorch-convention params for the kernel.

    PyTorch Linear stores W as (out, in); we pre-transpose to (in, out) so the kernel
    hot path is plain `x @ W`.  W0 is split into the x-part (compute dtype) and the
    one-hot-batch part (f32, zero-padded to a multiple of 8 rows for an aligned
    contraction) so the kernel never sees a concatenated input.
    """
    w0 = params["w0"]                      # (H, in_features + n_batches)
    h_dim = w0.shape[0]
    out_features = params["wp"].shape[0]

    if n_batches:
        nb_pad = _round_up(n_batches, 8)
        w0b = w0[:, in_features:].T.astype(jnp.float32)               # (n_batches, H)
        w0b = jnp.pad(w0b, ((0, nb_pad - n_batches), (0, 0)))         # (nb_pad, H)
    else:
        w0b = None

    return {
        "w0x": w0[:, :in_features].T.astype(compute_dtype),           # (in, H)
        "w0b": w0b,                                                   # (nb_pad, H) f32
        "b0": params["b0"].reshape(1, h_dim).astype(jnp.float32),
        "w1": params["w1"].T.astype(compute_dtype),                   # (H, H)
        "b1": params["b1"].reshape(1, h_dim).astype(jnp.float32),
        "wp": params["wp"].T.astype(compute_dtype),                   # (H, out)
        "bp": params["bp"].reshape(1, out_features).astype(jnp.float32),
    }


def discriminator_forward(x, b, prep, n_batches, *, tile_n=8192):
    """Discriminator forward pass.

    x: (N, in_features) float; b: (N,) int batch labels (unused if n_batches == 0)
    prep: output of prepare_params().  Returns (N, out_features) float32.
    """
    N, IN = x.shape
    H = prep["w1"].shape[0]
    O = prep["bp"].shape[1]

    # 8-row sublane alignment for f32/int32 streamed blocks.  Cap the tile so the row
    # grid always has >= 2 steps (keeps both v7x TensorCores busy); otherwise take the
    # biggest tile <= requested.
    unit = 8
    max_tile = max(unit, _round_up(pl.cdiv(N, 2), unit))
    tile_n = max(unit, min(_round_up(tile_n, unit), max_tile))
    grid = (pl.cdiv(N, tile_n),)           # ragged last block handled by Pallas

    const = lambda shape: pl.BlockSpec(shape, lambda i: (0, 0))

    in_specs = [pl.BlockSpec((tile_n, IN), lambda i: (i, 0))]          # x tile (f32)
    args = [x]
    if n_batches:
        nb_pad = prep["w0b"].shape[0]
        in_specs.append(pl.BlockSpec((tile_n, 1), lambda i: (i, 0)))   # labels, 4 B/row
        args.append(b.astype(jnp.int32).reshape(N, 1))
        in_specs += [const((IN, H)), const((nb_pad, H)), const((1, H)),
                     const((H, H)), const((1, H)), const((H, O)), const((1, O))]
        args += [prep["w0x"], prep["w0b"], prep["b0"],
                 prep["w1"], prep["b1"], prep["wp"], prep["bp"]]
    else:
        in_specs += [const((IN, H)), const((1, H)),
                     const((H, H)), const((1, H)), const((H, O)), const((1, O))]
        args += [prep["w0x"], prep["b0"],
                 prep["w1"], prep["b1"], prep["wp"], prep["bp"]]

    out = pl.pallas_call(
        functools.partial(_disc_kernel, has_batch=bool(n_batches)),
        out_shape=jax.ShapeDtypeStruct((N, O), jnp.float32),
        grid_spec=pltpu.PrefetchScalarGridSpec(
            num_scalar_prefetch=0,
            grid=grid,
            in_specs=in_specs,
            out_specs=pl.BlockSpec((tile_n, O), lambda i: (i, 0)),
        ),
        compiler_params=pltpu.CompilerParams(
            dimension_semantics=("parallel",),      # shards rows across v7x's 2 TCs
            vmem_limit_bytes=32 * 1024 * 1024,      # ~19 MiB worst case at tile_n=8192
        ),
    )(*args)

    return out


def init_params(key, in_features, out_features, n_batches, h_dim):
    """Deterministic synthetic parameters (PyTorch Linear convention: W is (out, in))."""
    d0 = in_features + n_batches
    ks = jax.random.split(key, 6)
    scale = 0.1
    return {
        "w0": scale * jax.random.normal(ks[0], (h_dim, d0), jnp.float32),
        "b0": scale * jax.random.normal(ks[1], (h_dim,), jnp.float32),
        "w1": scale * jax.random.normal(ks[2], (h_dim, h_dim), jnp.float32),
        "b1": scale * jax.random.normal(ks[3], (h_dim,), jnp.float32),
        "wp": scale * jax.random.normal(ks[4], (out_features, h_dim), jnp.float32),
        "bp": scale * jax.random.normal(ks[5], (out_features,), jnp.float32),
    }


def reference_forward(x, b, params, n_batches):
    """Pure-JAX f32 reference of the same forward pass."""
    if n_batches:
        x = jnp.concatenate([x, jax.nn.one_hot(b, n_batches, dtype=x.dtype)], axis=1)
    h = x @ params["w0"].T + params["b0"]
    h = jnp.where(h >= 0, h, 0.2 * h)
    h = h @ params["w1"].T + params["b1"]
    h = jnp.where(h >= 0, h, 0.2 * h)
    return h @ params["wp"].T + params["bp"]


if __name__ == "__main__":
    # Small shapes consistent with the module (h_depth=2), chosen so the default path
    # (2-step grid after the >=2-steps cap) and the multi-tile ragged-tail path are
    # both exercised.
    N = 40
    IN_FEATURES = 32
    N_BATCHES = 4
    H_DIM = 64
    OUT_FEATURES = 8

    key = jax.random.PRNGKey(0)
    kx, kb, kp = jax.random.split(key, 3)

    x = jax.random.normal(kx, (N, IN_FEATURES), jnp.float32)
    b = jax.random.randint(kb, (N,), 0, N_BATCHES, jnp.int32)
    params = init_params(kp, IN_FEATURES, OUT_FEATURES, N_BATCHES, H_DIM)
    y_ref = reference_forward(x, b, params, N_BATCHES)

    fwd = jax.jit(discriminator_forward, static_argnames=("n_batches", "tile_n"))

    # 1) Default bf16-MXU path (tile_n capped so the grid has 2 steps).
    prep_bf16 = prepare_params(params, IN_FEATURES, N_BATCHES, jnp.bfloat16)
    y_bf16 = fwd(x, b, prep_bf16, n_batches=N_BATCHES)
    jax.block_until_ready(y_bf16)
    assert y_bf16.shape == (N, OUT_FEATURES)
    assert jnp.allclose(y_bf16, y_ref, atol=5e-2, rtol=5e-2), "bf16 path mismatch"

    # 2) f32 path with a small tile -> 3-step grid + ragged (partial) last block.
    prep_f32 = prepare_params(params, IN_FEATURES, N_BATCHES, jnp.float32)
    y_f32 = fwd(x, b, prep_f32, n_batches=N_BATCHES, tile_n=16)
    jax.block_until_ready(y_f32)
    assert jnp.allclose(y_f32, y_ref, atol=1e-5, rtol=1e-5), "f32 path mismatch"

    # 3) n_batches == 0 branch (no label stream / one-hot matmul).
    params0 = init_params(kp, IN_FEATURES, OUT_FEATURES, 0, H_DIM)
    prep0 = prepare_params(params0, IN_FEATURES, 0, jnp.float32)
    y0 = fwd(x, b, prep0, n_batches=0)
    jax.block_until_ready(y0)
    y0_ref = reference_forward(x, b, params0, 0)
    assert jnp.allclose(y0, y0_ref, atol=1e-5, rtol=1e-5), "n_batches=0 path mismatch"

    print("KERNEL_OK")
</pallas_src>

<mosaic_0001>
module attributes {stable_mosaic.version = 11 : i64} {
  func.func @_disc_kernel(%arg0: i32, %arg1: memref<24x32xf32, #tpu.memory_space<vmem>>, %arg2: memref<24x1xi32, #tpu.memory_space<vmem>>, %arg3: memref<32x64xbf16, #tpu.memory_space<vmem>>, %arg4: memref<8x64xf32, #tpu.memory_space<vmem>>, %arg5: memref<1x64xf32, #tpu.memory_space<vmem>>, %arg6: memref<64x64xbf16, #tpu.memory_space<vmem>>, %arg7: memref<1x64xf32, #tpu.memory_space<vmem>>, %arg8: memref<64x8xbf16, #tpu.memory_space<vmem>>, %arg9: memref<1x8xf32, #tpu.memory_space<vmem>>, %arg10: memref<24x8xf32, #tpu.memory_space<vmem>>) attributes {dimension_semantics = [#tpu.dimension_semantics<parallel>], iteration_bounds = array<i64: 2>, scalar_prefetch = 0 : i64, scratch_operands = 0 : i64, tpu.core_type = #tpu.core_type<tc>, window_params = [{transform_indices = @transform_0, window_bounds = array<i64: 24, 32>}, {transform_indices = @transform_1, window_bounds = array<i64: 24, 1>}, {pipeline_mode = #tpu.pipeline_mode<synchronous>, transform_indices = @transform_2, window_bounds = array<i64: 32, 64>}, {pipeline_mode = #tpu.pipeline_mode<synchronous>, transform_indices = @transform_3, window_bounds = array<i64: 8, 64>}, {pipeline_mode = #tpu.pipeline_mode<synchronous>, transform_indices = @transform_4, window_bounds = array<i64: 1, 64>}, {pipeline_mode = #tpu.pipeline_mode<synchronous>, transform_indices = @transform_5, window_bounds = array<i64: 64, 64>}, {pipeline_mode = #tpu.pipeline_mode<synchronous>, transform_indices = @transform_6, window_bounds = array<i64: 1, 64>}, {pipeline_mode = #tpu.pipeline_mode<synchronous>, transform_indices = @transform_7, window_bounds = array<i64: 64, 8>}, {pipeline_mode = #tpu.pipeline_mode<synchronous>, transform_indices = @transform_8, window_bounds = array<i64: 1, 8>}, {transform_indices = @transform_9, window_bounds = array<i64: 24, 8>}]} {
    %c0 = arith.constant 0 : index
    %c0_0 = arith.constant 0 : index
    %0 = vector.load %arg1[%c0, %c0_0] : memref<24x32xf32, #tpu.memory_space<vmem>>, vector<24x32xf32>
    %1 = arith.truncf %0 : vector<24x32xf32> to vector<24x32xbf16>
    %c0_1 = arith.constant 0 : index
    %c0_2 = arith.constant 0 : index
    %2 = vector.load %arg3[%c0_1, %c0_2] : memref<32x64xbf16, #tpu.memory_space<vmem>>, vector<32x64xbf16>
    %cst = arith.constant dense<0.000000e+00> : vector<24x64xf32>
    %3 = tpu.matmul %1, %2, %cst {dimension_numbers = #tpu.dot_dimension_numbers<[1], [0], [0], [1], [0, 0, 1, 1], [], []>} : vector<24x32xbf16>, vector<32x64xbf16>, vector<24x64xf32> -> vector<24x64xf32>
    %c0_3 = arith.constant 0 : index
    %c0_4 = arith.constant 0 : index
    %4 = vector.load %arg5[%c0_3, %c0_4] : memref<1x64xf32, #tpu.memory_space<vmem>>, vector<1x64xf32>
    %5 = vector.broadcast %4 : vector<1x64xf32> to vector<24x64xf32>
    %6 = arith.addf %3, %5 : vector<24x64xf32>
    %7 = tpu.iota {dimensions = array<i32: 1>} : vector<24x8xi32>
    %c0_5 = arith.constant 0 : index
    %c0_6 = arith.constant 0 : index
    %8 = vector.load %arg2[%c0_5, %c0_6] : memref<24x1xi32, #tpu.memory_space<vmem>>, vector<24x1xi32>
    %9 = vector.broadcast %8 : vector<24x1xi32> to vector<24x8xi32>
    %10 = arith.cmpi eq, %9, %7 : vector<24x8xi32>
    %11 = arith.extui %10 : vector<24x8xi1> to vector<24x8xi32>
    %12 = arith.sitofp %11 : vector<24x8xi32> to vector<24x8xf32>
    %c0_7 = arith.constant 0 : index
    %c0_8 = arith.constant 0 : index
    %13 = vector.load %arg4[%c0_7, %c0_8] : memref<8x64xf32, #tpu.memory_space<vmem>>, vector<8x64xf32>
    %cst_9 = arith.constant dense<0.000000e+00> : vector<24x64xf32>
    %14 = tpu.matmul %12, %13, %cst_9 {dimension_numbers = #tpu.dot_dimension_numbers<[1], [0], [0], [1], [0, 0, 1, 1], [], []>} : vector<24x8xf32>, vector<8x64xf32>, vector<24x64xf32> -> vector<24x64xf32>
    %15 = arith.addf %6, %14 : vector<24x64xf32>
    %cst_10 = arith.constant 0.000000e+00 : f32
    %16 = vector.broadcast %cst_10 : f32 to vector<24x64xf32>
    %17 = arith.cmpf oge, %15, %16 : vector<24x64xf32>
    %cst_11 = arith.constant 2.000000e-01 : f32
    %18 = vector.broadcast %cst_11 : f32 to vector<24x64xf32>
    %19 = arith.mulf %18, %15 : vector<24x64xf32>
    %20 = arith.select %17, %15, %19 : vector<24x64xi1>, vector<24x64xf32>
    %21 = arith.truncf %20 : vector<24x64xf32> to vector<24x64xbf16>
    %c0_12 = arith.constant 0 : index
    %c0_13 = arith.constant 0 : index
    %22 = vector.load %arg6[%c0_12, %c0_13] : memref<64x64xbf16, #tpu.memory_space<vmem>>, vector<64x64xbf16>
    %cst_14 = arith.constant dense<0.000000e+00> : vector<24x64xf32>
    %23 = tpu.matmul %21, %22, %cst_14 {dimension_numbers = #tpu.dot_dimension_numbers<[1], [0], [0], [1], [0, 0, 1, 1], [], []>} : vector<24x64xbf16>, vector<64x64xbf16>, vector<24x64xf32> -> vector<24x64xf32>
    %c0_15 = arith.constant 0 : index
    %c0_16 = arith.constant 0 : index
    %24 = vector.load %arg7[%c0_15, %c0_16] : memref<1x64xf32, #tpu.memory_space<vmem>>, vector<1x64xf32>
    %25 = vector.broadcast %24 : vector<1x64xf32> to vector<24x64xf32>
    %26 = arith.addf %23, %25 : vector<24x64xf32>
    %cst_17 = arith.constant 0.000000e+00 : f32
    %27 = vector.broadcast %cst_17 : f32 to vector<24x64xf32>
    %28 = arith.cmpf oge, %26, %27 : vector<24x64xf32>
    %cst_18 = arith.constant 2.000000e-01 : f32
    %29 = vector.broadcast %cst_18 : f32 to vector<24x64xf32>
    %30 = arith.mulf %29, %26 : vector<24x64xf32>
    %31 = arith.select %28, %26, %30 : vector<24x64xi1>, vector<24x64xf32>
    %32 = arith.truncf %31 : vector<24x64xf32> to vector<24x64xbf16>
    %c0_19 = arith.constant 0 : index
    %c0_20 = arith.constant 0 : index
    %33 = vector.load %arg8[%c0_19, %c0_20] : memref<64x8xbf16, #tpu.memory_space<vmem>>, vector<64x8xbf16>
    %cst_21 = arith.constant dense<0.000000e+00> : vector<24x8xf32>
    %34 = tpu.matmul %32, %33, %cst_21 {dimension_numbers = #tpu.dot_dimension_numbers<[1], [0], [0], [1], [0, 0, 1, 1], [], []>} : vector<24x64xbf16>, vector<64x8xbf16>, vector<24x8xf32> -> vector<24x8xf32>
    %c0_22 = arith.constant 0 : index
    %c0_23 = arith.constant 0 : index
    %35 = vector.load %arg9[%c0_22, %c0_23] : memref<1x8xf32, #tpu.memory_space<vmem>>, vector<1x8xf32>
    %36 = vector.broadcast %35 : vector<1x8xf32> to vector<24x8xf32>
    %37 = arith.addf %34, %36 : vector<24x8xf32>
    %c0_24 = arith.constant 0 : index
    %c0_25 = arith.constant 0 : index
    %38 = vector.load %arg10[%c0_24, %c0_25] : memref<24x8xf32, #tpu.memory_space<vmem>>, vector<24x8xf32>
    tpu.vector_store %arg10[%c0_24, %c0_25], %37 {strides = array<i32>} : memref<24x8xf32, #tpu.memory_space<vmem>>, vector<24x8xf32>,
    return
  }
  func.func @transform_0(%arg0: i32) -> (i32, i32) {
    %c0_i32 = arith.constant 0 : i32
    %c0_i32_0 = arith.constant 0 : i32
    return %arg0, %c0_i32 : i32, i32
  }
  func.func @transform_1(%arg0: i32) -> (i32, i32) {
    %c0_i32 = arith.constant 0 : i32
    %c0_i32_0 = arith.constant 0 : i32
    return %arg0, %c0_i32 : i32, i32
  }
  func.func @transform_2(%arg0: i32) -> (i32, i32) {
    %c0_i32 = arith.constant 0 : i32
    %c0_i32_0 = arith.constant 0 : i32
    %c0_i32_1 = arith.constant 0 : i32
    return %c0_i32, %c0_i32_0 : i32, i32
  }
  func.func @transform_3(%arg0: i32) -> (i32, i32) {
    %c0_i32 = arith.constant 0 : i32
    %c0_i32_0 = arith.constant 0 : i32
    %c0_i32_1 = arith.constant 0 : i32
    return %c0_i32, %c0_i32_0 : i32, i32
  }
  func.func @transform_4(%arg0: i32) -> (i32, i32) {
    %c0_i32 = arith.constant 0 : i32
    %c0_i32_0 = arith.constant 0 : i32
    %c0_i32_1 = arith.constant 0 : i32
    return %c0_i32, %c0_i32_0 : i32, i32
  }
  func.func @transform_5(%arg0: i32) -> (i32, i32) {
    %c0_i32 = arith.constant 0 : i32
    %c0_i32_0 = arith.constant 0 : i32
    %c0_i32_1 = arith.constant 0 : i32
    return %c0_i32, %c0_i32_0 : i32, i32
  }
  func.func @transform_6(%arg0: i32) -> (i32, i32) {
    %c0_i32 = arith.constant 0 : i32
    %c0_i32_0 = arith.constant 0 : i32
    %c0_i32_1 = arith.constant 0 : i32
    return %c0_i32, %c0_i32_0 : i32, i32
  }
  func.func @transform_7(%arg0: i32) -> (i32, i32) {
    %c0_i32 = arith.constant 0 : i32
    %c0_i32_0 = arith.constant 0 : i32
    %c0_i32_1 = arith.constant 0 : i32
    return %c0_i32, %c0_i32_0 : i32, i32
  }
  func.func @transform_8(%arg0: i32) -> (i32, i32) {
    %c0_i32 = arith.constant 0 : i32
    %c0_i32_0 = arith.constant 0 : i32
    %c0_i32_1 = arith.constant 0 : i32
    return %c0_i32, %c0_i32_0 : i32, i32
  }
  func.func @transform_9(%arg0: i32) -> (i32, i32) {
    %c0_i32 = arith.constant 0 : i32
    %c0_i32_0 = arith.constant 0 : i32
    return %arg0, %c0_i32 : i32, i32
  }
}

</mosaic_0001>

<llo_original>
// kernel: discriminator_forward.1
$region0: #{discriminator_forward.1}
  #allocation0 [shape = 'u32[]', space=smem, size = 0x4, offset = 0x4, fixed_abs, tag = 'smem constant byte address 0x4 - core index']
  #allocation1 [shape = 'u32[144,128]{1,0:T(1,128)}', space=vmem, size = 0x12000, scoped, tag = 'internal scratch']
  %s0 = inlined_call_operand.vmem [shape: f32[40,32], index: 0, kind: input, shape index: {}]
  %s1 = inlined_call_operand.vmem [shape: s32[40,1], index: 1, kind: input, shape index: {}]
  %s2 = inlined_call_operand.vmem [shape: bf16[32,64], index: 2, kind: input, shape index: {}]
  %s3 = inlined_call_operand.vmem [shape: f32[8,64], index: 3, kind: input, shape index: {}]
  %s4 = inlined_call_operand.vmem [shape: f32[1,64], index: 4, kind: input, shape index: {}]
  %s5 = inlined_call_operand.vmem [shape: bf16[64,64], index: 5, kind: input, shape index: {}]
  %s6 = inlined_call_operand.vmem [shape: f32[1,64], index: 6, kind: input, shape index: {}]
  %s7 = inlined_call_operand.vmem [shape: bf16[64,8], index: 7, kind: input, shape index: {}]
  %s8 = inlined_call_operand.vmem [shape: f32[1,8], index: 8, kind: input, shape index: {}]
  %s9 = inlined_call_operand.vmem [shape: f32[40,8], index: 9, kind: output, shape index: {}]
  %s10 = sld [smem:[#allocation0]]
  $region117: #{discriminator_forward.1} parent=0
    _
  %s12 = ssub.s32 1, %s10
  %s13 = scalar_select 0, %s12, %s10
  $region1: #{discriminator_forward.1} parent=0
    #allocation2 [shape = 'u8[24576]{0}', space=vmem, size = 0x6000, scoped, tag = 'output window, operand 0']
    loop: start=0, step=1, limit=4
    $region2: #{discriminator_forward.1} parent=1 // loop_pre_header
      _
    $region3: #{discriminator_forward.1} parent=1 // loop_header
      %s15 = sphi 0, %s19
      %p16 = scmp.ge.s32.totalorder %s15, 4
      %s25 = sphi 0, %s27
      %s28 = sphi 0, %s25
      %s29 = sphi 0, %s28
      %s45 = sphi 0, %s29
      %s51 = sphi 0, %s53
      %s54 = sphi 0, %s51
      %s55 = sphi 0, %s54
      %s71 = sphi 0, %s55
      %s75 = sphi 0, %s75
      %s77 = sphi 0, %s75
      %s78 = sphi 0, %s77
      %s92 = sphi 0, %s78
      %s96 = sphi 0, %s96
      %s98 = sphi 0, %s96
      %s99 = sphi 0, %s98
      %s113 = sphi 0, %s99
      %s117 = sphi 0, %s117
      %s119 = sphi 0, %s117
      %s120 = sphi 0, %s119
      %s134 = sphi 0, %s120
      %s138 = sphi 0, %s138
      %s140 = sphi 0, %s138
      %s141 = sphi 0, %s140
      %s155 = sphi 0, %s141
      %s159 = sphi 0, %s159
      %s161 = sphi 0, %s159
      %s162 = sphi 0, %s161
      %s176 = sphi 0, %s162
      %s180 = sphi 0, %s180
      %s182 = sphi 0, %s180
      %s183 = sphi 0, %s182
      %s197 = sphi 0, %s183
      %s201 = sphi 0, %s201
      %s203 = sphi 0, %s201
      %s204 = sphi 0, %s203
      %s218 = sphi 0, %s204
      %s224 = sphi 0, %s226
      %s227 = sphi 0, %s224
      %s228 = sphi 0, %s227
      %s244 = sphi 0, %s228
    $region4: #{discriminator_forward.1} parent=1 // loop_header_branch
      %18 = sbr.rel (%p16) target = $region8
    $region5: #{discriminator_forward.1} parent=1 // loop_body
      %s20 = ssub.s32 %s15, 1
      %s21 = ssub.s32 %s15, 2
      %s22 = sadd.s32 %s15, 1
      %s23 = ssub.s32 %s15, %s22
      %p24 = scmp.eq.s32.totalorder %s23, 0
      %s26 = sadd.s32 %s25, 1
      %s27 = scalar_select %p24, %s25, %s26
      %p30 = pneg %p24
      %p31 = scmp.eq.s32.totalorder %s15, 1
      %p32 = por %p30, %p31
      %p33 = scmp.ne.s32.totalorder %s25, %s28
      %p34 = scmp.eq.s32.totalorder %s15, 0
      %p35 = por %p33, %p34
      %p36 = scmp.ne.s32.totalorder %s25, %s28
      %p37 = scmp.eq.s32.totalorder %s20, 1
      %p38 = por %p36, %p37
      %p39 = scmp.ne.s32.totalorder %s28, %s29
      %p40 = scmp.eq.s32.totalorder %s20, 0
      %p41 = por %p39, %p40
      %p42 = scmp.ne.s32.totalorder %s28, %s29
      %p43 = scmp.eq.s32.totalorder %s21, 1
      %p44 = por %p42, %p43
      %p46 = scmp.ne.s32.totalorder %s29, %s45
      %p47 = scmp.eq.s32.totalorder %s21, 0
      %p48 = por %p46, %p47
      %s49 = ssub.s32 %s15, %s22
      %p50 = scmp.eq.s32.totalorder %s49, 0
      %s52 = sadd.s32 %s51, 1
      %s53 = scalar_select %p50, %s51, %s52
      %p56 = pneg %p50
      %p57 = scmp.eq.s32.totalorder %s15, 1
      %p58 = por %p56, %p57
      %p59 = scmp.ne.s32.totalorder %s51, %s54
      %p60 = scmp.eq.s32.totalorder %s15, 0
      %p61 = por %p59, %p60
      %p62 = scmp.ne.s32.totalorder %s51, %s54
      %p63 = scmp.eq.s32.totalorder %s20, 1
      %p64 = por %p62, %p63
      %p65 = scmp.ne.s32.totalorder %s54, %s55
      %p66 = scmp.eq.s32.totalorder %s20, 0
      %p67 = por %p65, %p66
      %p68 = scmp.ne.s32.totalorder %s54, %s55
      %p69 = scmp.eq.s32.totalorder %s21, 1
      %p70 = por %p68, %p69
      %p72 = scmp.ne.s32.totalorder %s55, %s71
      %p73 = scmp.eq.s32.totalorder %s21, 0
      %p74 = por %p72, %p73
      %s76 = sadd.s32 %s75, 1
      %p79 = scmp.eq.s32.totalorder %s15, 1
      %p80 = scmp.ne.s32.totalorder %s75, %s77
      %p81 = scmp.eq.s32.totalorder %s15, 0
      %p82 = por %p80, %p81
      %p83 = scmp.ne.s32.totalorder %s75, %s77
      %p84 = scmp.eq.s32.totalorder %s20, 1
      %p85 = por %p83, %p84
      %p86 = scmp.ne.s32.totalorder %s77, %s78
      %p87 = scmp.eq.s32.totalorder %s20, 0
      %p88 = por %p86, %p87
      %p89 = scmp.ne.s32.totalorder %s77, %s78
      %p90 = scmp.eq.s32.totalorder %s21, 1
      %p91 = por %p89, %p90
      %p93 = scmp.ne.s32.totalorder %s78, %s92
      %p94 = scmp.eq.s32.totalorder %s21, 0
      %p95 = por %p93, %p94
      %s97 = sadd.s32 %s96, 1
      %p100 = scmp.eq.s32.totalorder %s15, 1
      %p101 = scmp.ne.s32.totalorder %s96, %s98
      %p102 = scmp.eq.s32.totalorder %s15, 0
      %p103 = por %p101, %p102
      %p104 = scmp.ne.s32.totalorder %s96, %s98
      %p105 = scmp.eq.s32.totalorder %s20, 1
      %p106 = por %p104, %p105
      %p107 = scmp.ne.s32.totalorder %s98, %s99
      %p108 = scmp.eq.s32.totalorder %s20, 0
      %p109 = por %p107, %p108
      %p110 = scmp.ne.s32.totalorder %s98, %s99
      %p111 = scmp.eq.s32.totalorder %s21, 1
      %p112 = por %p110, %p111
      %p114 = scmp.ne.s32.totalorder %s99, %s113
      %p115 = scmp.eq.s32.totalorder %s21, 0
      %p116 = por %p114, %p115
      %s118 = sadd.s32 %s117, 1
      %p121 = scmp.eq.s32.totalorder %s15, 1
      %p122 = scmp.ne.s32.totalorder %s117, %s119
      %p123 = scmp.eq.s32.totalorder %s15, 0
      %p124 = por %p122, %p123
      %p125 = scmp.ne.s32.totalorder %s117, %s119
      %p126 = scmp.eq.s32.totalorder %s20, 1
      %p127 = por %p125, %p126
      %p128 = scmp.ne.s32.totalorder %s119, %s120
      %p129 = scmp.eq.s32.totalorder %s20, 0
      %p130 = por %p128, %p129
      %p131 = scmp.ne.s32.totalorder %s119, %s120
      %p132 = scmp.eq.s32.totalorder %s21, 1
      %p133 = por %p131, %p132
      %p135 = scmp.ne.s32.totalorder %s120, %s134
      %p136 = scmp.eq.s32.totalorder %s21, 0
      %p137 = por %p135, %p136
      %s139 = sadd.s32 %s138, 1
      %p142 = scmp.eq.s32.totalorder %s15, 1
      %p143 = scmp.ne.s32.totalorder %s138, %s140
      %p144 = scmp.eq.s32.totalorder %s15, 0
      %p145 = por %p143, %p144
      %p146 = scmp.ne.s32.totalorder %s138, %s140
      %p147 = scmp.eq.s32.totalorder %s20, 1
      %p148 = por %p146, %p147
      %p149 = scmp.ne.s32.totalorder %s140, %s141
      %p150 = scmp.eq.s32.totalorder %s20, 0
      %p151 = por %p149, %p150
      %p152 = scmp.ne.s32.totalorder %s140, %s141
      %p153 = scmp.eq.s32.totalorder %s21, 1
      %p154 = por %p152, %p153
      %p156 = scmp.ne.s32.totalorder %s141, %s155
      %p157 = scmp.eq.s32.totalorder %s21, 0
      %p158 = por %p156, %p157
      %s160 = sadd.s32 %s159, 1
      %p163 = scmp.eq.s32.totalorder %s15, 1
      %p164 = scmp.ne.s32.totalorder %s159, %s161
      %p165 = scmp.eq.s32.totalorder %s15, 0
      %p166 = por %p164, %p165
      %p167 = scmp.ne.s32.totalorder %s159, %s161
      %p168 = scmp.eq.s32.totalorder %s20, 1
      %p169 = por %p167, %p168
      %p170 = scmp.ne.s32.totalorder %s161, %s162
      %p171 = scmp.eq.s32.totalorder %s20, 0
      %p172 = por %p170, %p171
      %p173 = scmp.ne.s32.totalorder %s161, %s162
      %p174 = scmp.eq.s32.totalorder %s21, 1
      %p175 = por %p173, %p174
      %p177 = scmp.ne.s32.totalorder %s162, %s176
      %p178 = scmp.eq.s32.totalorder %s21, 0
      %p179 = por %p177, %p178
      %s181 = sadd.s32 %s180, 1
      %p184 = scmp.eq.s32.totalorder %s15, 1
      %p185 = scmp.ne.s32.totalorder %s180, %s182
      %p186 = scmp.eq.s32.totalorder %s15, 0
      %p187 = por %p185, %p186
      %p188 = scmp.ne.s32.totalorder %s180, %s182
      %p189 = scmp.eq.s32.totalorder %s20, 1
      %p190 = por %p188, %p189
      %p191 = scmp.ne.s32.totalorder %s182, %s183
      %p192 = scmp.eq.s32.totalorder %s20, 0
      %p193 = por %p191, %p192
      %p194 = scmp.ne.s32.totalorder %s182, %s183
      %p195 = scmp.eq.s32.totalorder %s21, 1
      %p196 = por %p194, %p195
      %p198 = scmp.ne.s32.totalorder %s183, %s197
      %p199 = scmp.eq.s32.totalorder %s21, 0
      %p200 = por %p198, %p199
      %s202 = sadd.s32 %s201, 1
      %p205 = scmp.eq.s32.totalorder %s15, 1
      %p206 = scmp.ne.s32.totalorder %s201, %s203
      %p207 = scmp.eq.s32.totalorder %s15, 0
      %p208 = por %p206, %p207
      %p209 = scmp.ne.s32.totalorder %s201, %s203
      %p210 = scmp.eq.s32.totalorder %s20, 1
      %p211 = por %p209, %p210
      %p212 = scmp.ne.s32.totalorder %s203, %s204
      %p213 = scmp.eq.s32.totalorder %s20, 0
      %p214 = por %p212, %p213
      %p215 = scmp.ne.s32.totalorder %s203, %s204
      %p216 = scmp.eq.s32.totalorder %s21, 1
      %p217 = por %p215, %p216
      %p219 = scmp.ne.s32.totalorder %s204, %s218
      %p220 = scmp.eq.s32.totalorder %s21, 0
      %p221 = por %p219, %p220
      %s222 = ssub.s32 %s15, %s22
      %p223 = scmp.eq.s32.totalorder %s222, 0
      %s225 = sadd.s32 %s224, 1
      %s226 = scalar_select %p223, %s224, %s225
      %p229 = pneg %p223
      %p230 = scmp.eq.s32.totalorder %s15, 1
      %p231 = por %p229, %p230
      %p232 = scmp.ne.s32.totalorder %s224, %s227
      %p233 = scmp.eq.s32.totalorder %s15, 0
      %p234 = por %p232, %p233
      %p235 = scmp.ne.s32.totalorder %s224, %s227
      %p236 = scmp.eq.s32.totalorder %s20, 1
      %p237 = por %p235, %p236
      %p238 = scmp.ne.s32.totalorder %s227, %s228
      %p239 = scmp.eq.s32.totalorder %s20, 0
      %p240 = por %p238, %p239
      %p241 = scmp.ne.s32.totalorder %s227, %s228
      %p242 = scmp.eq.s32.totalorder %s21, 1
      %p243 = por %p241, %p242
      %p245 = scmp.ne.s32.totalorder %s228, %s244
      %p246 = scmp.eq.s32.totalorder %s21, 0
      %p247 = por %p245, %p246
      %p248 = scmp.le.s32.totalorder 1, %s15
      %p249 = scmp.lt.s32.totalorder %s15, 3
      %p250 = pnand %p248, %p249
      %p251 = pneg %p250
      // Predicated region
      $region9: #{discriminator_forward.1} parent=5 // pred_check
        _
      $region10: #{discriminator_forward.1} parent=5 // pred_check_branch
        %253 = sbr.rel (%p250) target = $region12
      $region11: #{discriminator_forward.1} parent=5 // pred_region
        %s254 = ssub.s32 %s15, 1
        // Predicated region
        $region13: #{discriminator_forward.1} parent=11 // pred_check
          %p255 = pneg %p88
        $region14: #{discriminator_forward.1} parent=11 // pred_check_branch
          %257 = sbr.rel (%p255) target = $region16
        $region15: #{discriminator_forward.1} parent=11 // pred_region
          _
        $region16: #{discriminator_forward.1} parent=11 // pred_fallthru
          _
        // Predicated region
        $region17: #{discriminator_forward.1} parent=11 // pred_check
          %p258 = pneg %p109
        $region18: #{discriminator_forward.1} parent=11 // pred_check_branch
          %260 = sbr.rel (%p258) target = $region20
        $region19: #{discriminator_forward.1} parent=11 // pred_region
          _
        $region20: #{discriminator_forward.1} parent=11 // pred_fallthru
          _
        // Predicated region
        $region21: #{discriminator_forward.1} parent=11 // pred_check
          %p261 = pneg %p130
        $region22: #{discriminator_forward.1} parent=11 // pred_check_branch
          %263 = sbr.rel (%p261) target = $region24
        $region23: #{discriminator_forward.1} parent=11 // pred_region
          _
        $region24: #{discriminator_forward.1} parent=11 // pred_fallthru
          _
        // Predicated region
        $region25: #{discriminator_forward.1} parent=11 // pred_check
          %p264 = pneg %p151
        $region26: #{discriminator_forward.1} parent=11 // pred_check_branch
          %266 = sbr.rel (%p264) target = $region28
        $region27: #{discriminator_forward.1} parent=11 // pred_region
          _
        $region28: #{discriminator_forward.1} parent=11 // pred_fallthru
          _
        // Predicated region
        $region29: #{discriminator_forward.1} parent=11 // pred_check
          %p267 = pneg %p172
        $region30: #{discriminator_forward.1} parent=11 // pred_check_branch
          %269 = sbr.rel (%p267) target = $region32
        $region31: #{discriminator_forward.1} parent=11 // pred_region
          _
        $region32: #{discriminator_forward.1} parent=11 // pred_fallthru
          _
        // Predicated region
        $region33: #{discriminator_forward.1} parent=11 // pred_check
          %p270 = pneg %p193
        $region34: #{discriminator_forward.1} parent=11 // pred_check_branch
          %272 = sbr.rel (%p270) target = $region36
        $region35: #{discriminator_forward.1} parent=11 // pred_region
          _
        $region36: #{discriminator_forward.1} parent=11 // pred_fallthru
          _
        // Predicated region
        $region37: #{discriminator_forward.1} parent=11 // pred_check
          %p273 = pneg %p214
        $region38: #{discriminator_forward.1} parent=11 // pred_check_branch
          %275 = sbr.rel (%p273) target = $region40
        $region39: #{discriminator_forward.1} parent=11 // pred_region
          _
        $region40: #{discriminator_forward.1} parent=11 // pred_fallthru
          _
      $region12: #{discriminator_forward.1} parent=5 // pred_fallthru
        _
      %p276 = scmp.lt.s32.totalorder %s15, 2
      // Predicated region
      $region41: #{discriminator_forward.1} parent=5 // pred_check
        %p277 = pneg %p276
      $region42: #{discriminator_forward.1} parent=5 // pred_check_branch
        %279 = sbr.rel (%p277) target = $region44
      $region43: #{discriminator_forward.1} parent=5 // pred_region
        // Predicated region
        $region45: #{discriminator_forward.1} parent=43 // pred_check
          %p280 = pneg %p35
        $region46: #{discriminator_forward.1} parent=43 // pred_check_branch
          %282 = sbr.rel (%p280) target = $region48
        $region47: #{discriminator_forward.1} parent=43 // pred_region
          %s283 = smul.u32 3, %s15
          %s284 = ssub.s32 5, %s283
          %p285 = scmp.lt.s32.totalorder %s284, 3
          %s286 = scalar_select %p285, %s284, 3
          %s287 = smul.u32 128, %s286
          %p288 = scmp.lt.s32.totalorder %s283, 4
          %s289 = scalar_select %p288, %s283, 4
          %s290 = smul.addr %s289, 8
          %s291 = scalar_lea.vmem %s0, %s290
          %s292 = smul.u32 3, %s15
          %s293 = ssub.s32 5, %s292
          %p294 = scmp.lt.s32.totalorder %s293, 3
          %s295 = scalar_select %p294, %s293, 3
          %s296 = smul.u32 128, %s295
        $region48: #{discriminator_forward.1} parent=43 // pred_fallthru
          _
        // Predicated region
        $region49: #{discriminator_forward.1} parent=43 // pred_check
          %p297 = pneg %p61
        $region50: #{discriminator_forward.1} parent=43 // pred_check_branch
          %299 = sbr.rel (%p297) target = $region52
        $region51: #{discriminator_forward.1} parent=43 // pred_region
          %s300 = smul.u32 3, %s15
          %s301 = ssub.s32 5, %s300
          %p302 = scmp.lt.s32.totalorder %s301, 3
          %s303 = scalar_select %p302, %s301, 3
          %s304 = smul.u32 128, %s303
          %p305 = scmp.lt.s32.totalorder %s300, 4
          %s306 = scalar_select %p305, %s300, 4
          %s307 = smul.addr %s306, 8
          %s308 = scalar_lea.vmem %s1, %s307
          %s309 = smul.u32 3, %s15
          %s310 = ssub.s32 5, %s309
          %p311 = scmp.lt.s32.totalorder %s310, 3
          %s312 = scalar_select %p311, %s310, 3
          %s313 = smul.u32 128, %s312
        $region52: #{discriminator_forward.1} parent=43 // pred_fallthru
          _
      $region44: #{discriminator_forward.1} parent=5 // pred_fallthru
        _
      %p314 = scmp.le.s32.totalorder 1, %s15
      %p315 = scmp.lt.s32.totalorder %s15, 3
      %p316 = pnand %p314, %p315
      %p317 = pneg %p316
      // Predicated region
      $region53: #{discriminator_forward.1} parent=5 // pred_check
        _
      $region54: #{discriminator_forward.1} parent=5 // pred_check_branch
        %319 = sbr.rel (%p316) target = $region56
      $region55: #{discriminator_forward.1} parent=5 // pred_region
        %s320 = ssub.s32 %s15, 1
        %s321 = smul.u32 3, %s20
        %s322 = ssub.s32 5, %s321
        %p323 = scmp.lt.s32.totalorder %s322, 3
        %s324 = scalar_select %p323, %s322, 3
        %s325 = smul.u32 128, %s324
        %p326 = scmp.lt.s32.totalorder %s321, 4
        %s327 = scalar_select %p326, %s321, 4
        %s328 = smul.addr %s327, 8
        %s329 = scalar_lea.vmem %s0, %s328
        %p330 = pneg %p41
        %p331 = pneg %p38
        %s332 = smul.u32 3, %s20
        %s333 = ssub.s32 5, %s332
        %p334 = scmp.lt.s32.totalorder %s333, 3
        %s335 = scalar_select %p334, %s333, 3
        %s336 = smul.u32 128, %s335
        %p337 = scmp.lt.s32.totalorder %s332, 4
        %s338 = scalar_select %p337, %s332, 4
        %s339 = smul.addr %s338, 8
        %s340 = scalar_lea.vmem %s1, %s339
        %p341 = pneg %p67
        %p342 = pneg %p64
        %p343 = pneg %p88
        %p344 = pneg %p85
        %p345 = pneg %p109
        %p346 = pneg %p106
        %p347 = pneg %p130
        %p348 = pneg %p127
        %p349 = pneg %p151
        %p350 = pneg %p148
        %p351 = pneg %p172
        %p352 = pneg %p169
        %p353 = pneg %p193
        %p354 = pneg %p190
        %p355 = pneg %p214
        %p356 = pneg %p211
        %p357 = pneg %p240
        %p358 = pneg %p237
        %s359 = sand.u32 %s227, 1
        %s360 = sand.u32 %s227, 1
        %s361 = smul.addr %s360, 24
        %s362 = scalar_lea.vmem [#allocation2], %s361
        %s363 = smul.u32 3, %s20
        %s364 = ssub.s32 5, %s363
        %p365 = scmp.lt.s32.totalorder %s364, 3
        %s366 = scalar_select %p365, %s364, 3
        %s367 = smul.u32 128, %s366
        %p368 = scmp.lt.s32.totalorder %s363, 4
        %s369 = scalar_select %p368, %s363, 4
        %s370 = smul.addr %s369, 8
        %s371 = scalar_lea.vmem %s0, %s370
        %s372 = smul.u32 3, %s20
        %s373 = ssub.s32 5, %s372
        %p374 = scmp.lt.s32.totalorder %s373, 3
        %s375 = scalar_select %p374, %s373, 3
        %s376 = smul.u32 128, %s375
        %s377 = smul.u32 3, %s20
        %s378 = ssub.s32 5, %s377
        %p379 = scmp.lt.s32.totalorder %s378, 3
        %s380 = scalar_select %p379, %s378, 3
        %s381 = smul.u32 128, %s380
        %p382 = scmp.lt.s32.totalorder %s377, 4
        %s383 = scalar_select %p382, %s377, 4
        %s384 = smul.addr %s383, 8
        %s385 = scalar_lea.vmem %s1, %s384
        %s386 = smul.u32 3, %s20
        %s387 = ssub.s32 5, %s386
        %p388 = scmp.lt.s32.totalorder %s387, 3
        %s389 = scalar_select %p388, %s387, 3
        %s390 = smul.u32 128, %s389
        %s391 = smul.u32 3, %s20
        %s392 = ssub.s32 5, %s391
        %p393 = scmp.lt.s32.totalorder %s392, 3
        %s394 = scalar_select %p393, %s392, 3
        %s395 = smul.u32 128, %s394
        %v397 = vld [vmem:[%s371] sm:$0xff]
        %v398 = vld [vmem:[%s371 + $0x8] sm:$0xff]
        %v399 = vld [vmem:[%s371 + $0x10] sm:$0xff]
        %v400 = vpack.c.bf16 %v398, %v397
        %v401 = vpack.c.bf16 %v399, %v399
        %v402 = vld [vmem:[%s2] sm:$0xf]
        %v403 = vld [vmem:[%s2 + $0x4] sm:$0xf]
        %v404 = vld [vmem:[%s2 + $0x8] sm:$0xf]
        %v405 = vld [vmem:[%s2 + $0xc] sm:$0xf]
        %v406 = vld [vmem:[%s4] sm:$0x1]
        %v408 = vlaneseq
        %v409 = vshrl.u32 %v408, 7
        %v410 = vsub.s32 0, %v409
        %v411 = vrot.slane %v406, %v410
        %v417 = vunpack.c.l.b16 %v402
        %v418 = vunpack.c.l.b16 %v403
        %v419 = vunpack.c.l.b16 %v404
        %v420 = vunpack.c.l.b16 %v405
        %v421 = vpack.c.b16 %v418, %v417
        %v422 = vpack.c.b16 %v420, %v419
        %vm425 = vcmask 261120
        %v427 = vsel %vm425, %v400, 0
        %v430 = vsel %vm425, %v401, 0
        %432 = vmatprep.subr.bf16.mxu0 0
        %433 = vmatpush1.bf16.msra.mxu0 %v421
        %434 = vmatprep.subr.bf16.mxu0 0
        %435 = vmatpush1.bf16.msra.mxu0 %v422
        %436 = vmatprep.subr.bf16.mxu0 0
        %437 = vmatpush1.bf16.msra.mxu0 0
        %438 = vmatprep.subr.bf16.mxu0 0
        %439 = vmatpush1.bf16.msra.mxu0 0
        %440 = vmatprep.subr.bf16.mxu0 0
        %441 = vmatpush1.bf16.msra.mxu0 0
        %442 = vmatprep.subr.bf16.mxu0 0
        %443 = vmatpush1.bf16.msra.mxu0 0
        %444 = vmatprep.subr.bf16.mxu0 0
        %445 = vmatpush1.bf16.msra.mxu0 0
        %446 = vmatprep.subr.bf16.mxu0 0
        %447 = vmatpush1.bf16.msra.mxu0 0
        %448 = vmatprep.subr.bf16.mxu0 0
        %449 = vmatpush1.bf16.msra.mxu0 0
        %450 = vmatprep.subr.bf16.mxu0 0
        %451 = vmatpush1.bf16.msra.mxu0 0
        %452 = vmatprep.subr.bf16.mxu0 0
        %453 = vmatpush1.bf16.msra.mxu0 0
        %454 = vmatprep.subr.bf16.mxu0 0
        %455 = vmatpush1.bf16.msra.mxu0 0
        %456 = vmatprep.subr.bf16.mxu0 0
        %457 = vmatpush1.bf16.msra.mxu0 0
        %458 = vmatprep.subr.bf16.mxu0 0
        %459 = vmatpush1.bf16.msra.mxu0 0
        %460 = vmatprep.subr.bf16.mxu0 0
        %461 = vmatpush1.bf16.msra.mxu0 0
        %462 = vmatprep.subr.bf16.mxu0 0
        %463 = vmatpush1.bf16.msra.mxu0 0
        %464 = vmatprep.mubr.bf16.mxu0 0
        %465 = vmatmul.mubr.bf16.gmra.mrb[0].mxu0 %v427
        %v466 = vpop.f32.mrb[0].mxu0
        %v467 = vadd.f32 %v411, %v466
        %v468 = vpop.f32.mrb[0].mxu0
        %v469 = vpop.f32.mrb[0].mxu0
        %v470 = vadd.f32 %v411, %v469
        %v471 = vpop.f32.mrb[0].mxu0
        %472 = vmatprep.mubr.bf16.mxu0 0
        %473 = vmatmul.mubr.bf16.gmra.mrb[0].mxu0 %v430
        %v474 = vpop.f32.mrb[0].mxu0
        %v475 = vadd.f32 %v411, %v474
        %v476 = vpop.f32.mrb[0].mxu0
        %v477 = vpop.f32.mrb[0].mxu0
        %v478 = vpop.f32.mrb[0].mxu0
        %479 = vdwg.mxu0
        %v480 = vlaneseq
        %v481 = vand.u32 %v480, 127
        %v482 = vld [vmem:[%s385] sm:$0xff]
        %v483 = vld [vmem:[%s385 + $0x8] sm:$0xff]
        %v484 = vld [vmem:[%s385 + $0x10] sm:$0xff]
        %485 = vset.pattern.permute.xlu0 0
        %486 = vperm.xlu0 %485, %v482
        %v487 = vpop.permute.xlu0 %486
        %488 = vset.pattern.permute.xlu0 0
        %489 = vperm.xlu0 %488, %v483
        %v490 = vpop.permute.xlu0 %489
        %491 = vset.pattern.permute.xlu0 0
        %492 = vperm.xlu0 %491, %v484
        %v493 = vpop.permute.xlu0 %492
        %vm494 = vcmp.eq.s32.totalorder %v487, %v481
        %vm495 = vcmp.eq.s32.totalorder %v490, %v481
        %vm496 = vcmp.eq.s32.totalorder %v493, %v481
        %v497 = vsel %vm494, 1, 0
        %v498 = vsel %vm495, 1, 0
        %v499 = vsel %vm496, 1, 0
        %v500 = vcvt.s32.f32 %v497
        %v501 = vcvt.s32.f32 %v498
        %v502 = vcvt.s32.f32 %v499
        %v503 = vld [vmem:[%s3] sm:$0xff]
        %vm504 = vcmask 64512
        %v506 = vsel %vm504, %v500, 0
        %v509 = vsel %vm504, %v501, 0
        %v512 = vsel %vm504, %v502, 0
        %514 = vmatprep.subr.mxu0 0.0
        %515 = vmatpush1.msra.mxu0 %v503
        %516 = vmatprep.subr.mxu0 0.0
        %517 = vmatpush1.msra.mxu0 0.0
        %518 = vmatprep.subr.mxu0 0.0
        %519 = vmatpush1.msra.mxu0 0.0
        %520 = vmatprep.subr.mxu0 0.0
        %521 = vmatpush1.msra.mxu0 0.0
        %522 = vmatprep.subr.mxu0 0.0
        %523 = vmatpush1.msra.mxu0 0.0
        %524 = vmatprep.subr.mxu0 0.0
        %525 = vmatpush1.msra.mxu0 0.0
        %526 = vmatprep.subr.mxu0 0.0
        %527 = vmatpush1.msra.mxu0 0.0
        %528 = vmatprep.subr.mxu0 0.0
        %529 = vmatpush1.msra.mxu0 0.0
        %530 = vmatprep.subr.mxu0 0.0
        %531 = vmatpush1.msra.mxu0 0.0
        %532 = vmatprep.subr.mxu0 0.0
        %533 = vmatpush1.msra.mxu0 0.0
        %534 = vmatprep.subr.mxu0 0.0
        %535 = vmatpush1.msra.mxu0 0.0
        %536 = vmatprep.subr.mxu0 0.0
        %537 = vmatpush1.msra.mxu0 0.0
        %538 = vmatprep.subr.mxu0 0.0
        %539 = vmatpush1.msra.mxu0 0.0
        %540 = vmatprep.subr.mxu0 0.0
        %541 = vmatpush1.msra.mxu0 0.0
        %542 = vmatprep.subr.mxu0 0.0
        %543 = vmatpush1.msra.mxu0 0.0
        %544 = vmatprep.subr.mxu0 0.0
        %545 = vmatpush1.msra.mxu0 0.0
        %546 = vmatprep.subr.mxu0 0.0
        %547 = vmatpush1.msra.mxu0 0.0
        %548 = vmatprep.subr.mxu0 0.0
        %549 = vmatpush1.msra.mxu0 0.0
        %550 = vmatprep.subr.mxu0 0.0
        %551 = vmatpush1.msra.mxu0 0.0
        %552 = vmatprep.subr.mxu0 0.0
        %553 = vmatpush1.msra.mxu0 0.0
        %554 = vmatprep.subr.mxu0 0.0
        %555 = vmatpush1.msra.mxu0 0.0
        %556 = vmatprep.subr.mxu0 0.0
        %557 = vmatpush1.msra.mxu0 0.0
        %558 = vmatprep.subr.mxu0 0.0
        %559 = vmatpush1.msra.mxu0 0.0
        %560 = vmatprep.subr.mxu0 0.0
        %561 = vmatpush1.msra.mxu0 0.0
        %562 = vmatprep.subr.mxu0 0.0
        %563 = vmatpush1.msra.mxu0 0.0
        %564 = vmatprep.subr.mxu0 0.0
        %565 = vmatpush1.msra.mxu0 0.0
        %566 = vmatprep.subr.mxu0 0.0
        %567 = vmatpush1.msra.mxu0 0.0
        %568 = vmatprep.subr.mxu0 0.0
        %569 = vmatpush1.msra.mxu0 0.0
        %570 = vmatprep.subr.mxu0 0.0
        %571 = vmatpush1.msra.mxu0 0.0
        %572 = vmatprep.subr.mxu0 0.0
        %573 = vmatpush1.msra.mxu0 0.0
        %574 = vmatprep.subr.mxu0 0.0
        %575 = vmatpush1.msra.mxu0 0.0
        %576 = vmatprep.subr.mxu0 0.0
        %577 = vmatpush1.msra.mxu0 0.0
        %578 = vmatprep.mubr.f32.mxu0 0.0
        %579 = vmatmul.mubr.f32.gmra.mrb[0].mxu0 %v506
        %v580 = vpop.f32.mrb[0].mxu0
        %v581 = vadd.f32 0.0, %v580
        %v582 = vpop.f32.mrb[0].mxu0
        %583 = vmatprep.mubr.f32.mxu0 0.0
        %584 = vmatmul.mubr.f32.gmra.mrb[0].mxu0 %v509
        %v585 = vpop.f32.mrb[0].mxu0
        %v586 = vadd.f32 0.0, %v585
        %v587 = vpop.f32.mrb[0].mxu0
        %588 = vmatprep.mubr.f32.mxu0 0.0
        %589 = vmatmul.mubr.f32.gmra.mrb[0].mxu0 %v512
        %v590 = vpop.f32.mrb[0].mxu0
        %v591 = vadd.f32 0.0, %v590
        %v592 = vpop.f32.mrb[0].mxu0
        %593 = vdwg.mxu0
        %v594 = vadd.f32 %v467, %v581
        %v595 = vadd.f32 %v470, %v586
        %v596 = vadd.f32 %v475, %v591
        %vm597 = vcmp.ge.f32.partialorder %v594, 0.0
        %vm598 = vcmp.ge.f32.partialorder %v595, 0.0
        %vm599 = vcmp.ge.f32.partialorder %v596, 0.0
        %v600 = vmul.f32 %v594, 0.2
        %v601 = vmul.f32 %v595, 0.2
        %v602 = vmul.f32 %v596, 0.2
        %v603 = vsel %vm597, %v594, %v600
        %v604 = vsel %vm598, %v595, %v601
        %v605 = vsel %vm599, %v596, %v602
        %v606 = vpack.c.bf16 %v604, %v603
        %v607 = vpack.c.bf16 %v605, %v605
        %v608 = vld [vmem:[%s5] sm:$0xf]
        %v609 = vld [vmem:[%s5 + $0x4] sm:$0xf]
        %v610 = vld [vmem:[%s5 + $0x8] sm:$0xf]
        %v611 = vld [vmem:[%s5 + $0xc] sm:$0xf]
        %v612 = vld [vmem:[%s5 + $0x10] sm:$0xf]
        %v613 = vld [vmem:[%s5 + $0x14] sm:$0xf]
        %v614 = vld [vmem:[%s5 + $0x18] sm:$0xf]
        %v615 = vld [vmem:[%s5 + $0x1c] sm:$0xf]
        %v616 = vld [vmem:[%s6] sm:$0x1]
        %v618 = vlaneseq
        %v619 = vshrl.u32 %v618, 7
        %v620 = vsub.s32 0, %v619
        %v621 = vrot.slane %v616, %v620
        %v631 = vunpack.c.l.b16 %v608
        %v632 = vunpack.c.l.b16 %v609
        %v633 = vunpack.c.l.b16 %v610
        %v634 = vunpack.c.l.b16 %v611
        %v635 = vunpack.c.l.b16 %v612
        %v636 = vunpack.c.l.b16 %v613
        %v637 = vunpack.c.l.b16 %v614
        %v638 = vunpack.c.l.b16 %v615
        %v639 = vpack.c.b16 %v632, %v631
        %v640 = vpack.c.b16 %v634, %v633
        %v641 = vpack.c.b16 %v636, %v635
        %v642 = vpack.c.b16 %v638, %v637
        %vm647 = vcmask 523264
        %v649 = vsel %vm647, %v606, 0
        %v652 = vsel %vm647, %v607, 0
        %654 = vmatprep.subr.bf16.mxu0 0
        %655 = vmatpush1.bf16.msra.mxu0 %v639
        %656 = vmatprep.subr.bf16.mxu0 0
        %657 = vmatpush1.bf16.msra.mxu0 %v640
        %658 = vmatprep.subr.bf16.mxu0 0
        %659 = vmatpush1.bf16.msra.mxu0 %v641
        %660 = vmatprep.subr.bf16.mxu0 0
        %661 = vmatpush1.bf16.msra.mxu0 %v642
        %662 = vmatprep.subr.bf16.mxu0 0
        %663 = vmatpush1.bf16.msra.mxu0 0
        %664 = vmatprep.subr.bf16.mxu0 0
        %665 = vmatpush1.bf16.msra.mxu0 0
        %666 = vmatprep.subr.bf16.mxu0 0
        %667 = vmatpush1.bf16.msra.mxu0 0
        %668 = vmatprep.subr.bf16.mxu0 0
        %669 = vmatpush1.bf16.msra.mxu0 0
        %670 = vmatprep.subr.bf16.mxu0 0
        %671 = vmatpush1.bf16.msra.mxu0 0
        %672 = vmatprep.subr.bf16.mxu0 0
        %673 = vmatpush1.bf16.msra.mxu0 0
        %674 = vmatprep.subr.bf16.mxu0 0
        %675 = vmatpush1.bf16.msra.mxu0 0
        %676 = vmatprep.subr.bf16.mxu0 0
        %677 = vmatpush1.bf16.msra.mxu0 0
        %678 = vmatprep.subr.bf16.mxu0 0
        %679 = vmatpush1.bf16.msra.mxu0 0
        %680 = vmatprep.subr.bf16.mxu0 0
        %681 = vmatpush1.bf16.msra.mxu0 0
        %682 = vmatprep.subr.bf16.mxu0 0
        %683 = vmatpush1.bf16.msra.mxu0 0
        %684 = vmatprep.subr.bf16.mxu0 0
        %685 = vmatpush1.bf16.msra.mxu0 0
        %686 = vmatprep.mubr.bf16.mxu0 0
        %687 = vmatmul.mubr.bf16.gmra.mrb[0].mxu0 %v649
        %v688 = vpop.f32.mrb[0].mxu0
        %v689 = vadd.f32 %v621, %v688
        %v690 = vpop.f32.mrb[0].mxu0
        %v691 = vpop.f32.mrb[0].mxu0
        %v692 = vadd.f32 %v621, %v691
        %v693 = vpop.f32.mrb[0].mxu0
        %694 = vmatprep.mubr.bf16.mxu0 0
        %695 = vmatmul.mubr.bf16.gmra.mrb[0].mxu0 %v652
        %v696 = vpop.f32.mrb[0].mxu0
        %v697 = vadd.f32 %v621, %v696
        %v698 = vpop.f32.mrb[0].mxu0
        %v699 = vpop.f32.mrb[0].mxu0
        %v700 = vpop.f32.mrb[0].mxu0
        %701 = vdwg.mxu0
        %vm702 = vcmp.ge.f32.partialorder %v689, 0.0
        %vm703 = vcmp.ge.f32.partialorder %v692, 0.0
        %vm704 = vcmp.ge.f32.partialorder %v697, 0.0
        %v705 = vmul.f32 %v689, 0.2
        %v706 = vmul.f32 %v692, 0.2
        %v707 = vmul.f32 %v697, 0.2
        %v708 = vsel %vm702, %v689, %v705
        %v709 = vsel %vm703, %v692, %v706
        %v710 = vsel %vm704, %v697, %v707
        %v711 = vpack.c.bf16 %v709, %v708
        %v712 = vpack.c.bf16 %v710, %v710
        %v713 = vld [vmem:[%s7] sm:$0xf]
        %v714 = vld [vmem:[%s7 + $0x4] sm:$0xf]
        %v715 = vld [vmem:[%s7 + $0x8] sm:$0xf]
        %v716 = vld [vmem:[%s7 + $0xc] sm:$0xf]
        %v717 = vld [vmem:[%s7 + $0x10] sm:$0xf]
        %v718 = vld [vmem:[%s7 + $0x14] sm:$0xf]
        %v719 = vld [vmem:[%s7 + $0x18] sm:$0xf]
        %v720 = vld [vmem:[%s7 + $0x1c] sm:$0xf]
        %v721 = vld [vmem:[%s8] sm:$0x1]
        %v723 = vlaneseq
        %v724 = vshrl.u32 %v723, 7
        %v725 = vsub.s32 0, %v724
        %v726 = vrot.slane %v721, %v725
        %v736 = vunpack.c.l.b16 %v713
        %v737 = vunpack.c.l.b16 %v714
        %v738 = vunpack.c.l.b16 %v715
        %v739 = vunpack.c.l.b16 %v716
        %v740 = vunpack.c.l.b16 %v717
        %v741 = vunpack.c.l.b16 %v718
        %v742 = vunpack.c.l.b16 %v719
        %v743 = vunpack.c.l.b16 %v720
        %v744 = vpack.c.b16 %v737, %v736
        %v745 = vpack.c.b16 %v739, %v738
        %v746 = vpack.c.b16 %v741, %v740
        %v747 = vpack.c.b16 %v743, %v742
        %v753 = vsel %vm647, %v711, 0
        %v756 = vsel %vm647, %v712, 0
        %758 = vmatprep.subr.bf16.mxu0 0
        %759 = vmatpush1.bf16.msra.mxu0 %v744
        %760 = vmatprep.subr.bf16.mxu0 0
        %761 = vmatpush1.bf16.msra.mxu0 %v745
        %762 = vmatprep.subr.bf16.mxu0 0
        %763 = vmatpush1.bf16.msra.mxu0 %v746
        %764 = vmatprep.subr.bf16.mxu0 0
        %765 = vmatpush1.bf16.msra.mxu0 %v747
        %766 = vmatprep.subr.bf16.mxu0 0
        %767 = vmatpush1.bf16.msra.mxu0 0
        %768 = vmatprep.subr.bf16.mxu0 0
        %769 = vmatpush1.bf16.msra.mxu0 0
        %770 = vmatprep.subr.bf16.mxu0 0
        %771 = vmatpush1.bf16.msra.mxu0 0
        %772 = vmatprep.subr.bf16.mxu0 0
        %773 = vmatpush1.bf16.msra.mxu0 0
        %774 = vmatprep.subr.bf16.mxu0 0
        %775 = vmatpush1.bf16.msra.mxu0 0
        %776 = vmatprep.subr.bf16.mxu0 0
        %777 = vmatpush1.bf16.msra.mxu0 0
        %778 = vmatprep.subr.bf16.mxu0 0
        %779 = vmatpush1.bf16.msra.mxu0 0
        %780 = vmatprep.subr.bf16.mxu0 0
        %781 = vmatpush1.bf16.msra.mxu0 0
        %782 = vmatprep.subr.bf16.mxu0 0
        %783 = vmatpush1.bf16.msra.mxu0 0
        %784 = vmatprep.subr.bf16.mxu0 0
        %785 = vmatpush1.bf16.msra.mxu0 0
        %786 = vmatprep.subr.bf16.mxu0 0
        %787 = vmatpush1.bf16.msra.mxu0 0
        %788 = vmatprep.subr.bf16.mxu0 0
        %789 = vmatpush1.bf16.msra.mxu0 0
        %790 = vmatprep.mubr.bf16.mxu0 0
        %791 = vmatmul.mubr.bf16.gmra.mrb[0].mxu0 %v753
        %v792 = vpop.f32.mrb[0].mxu0
        %v793 = vadd.f32 %v726, %v792
        %v794 = vpop.f32.mrb[0].mxu0
        %v795 = vpop.f32.mrb[0].mxu0
        %v796 = vadd.f32 %v726, %v795
        %v797 = vpop.f32.mrb[0].mxu0
        %798 = vmatprep.mubr.bf16.mxu0 0
        %799 = vmatmul.mubr.bf16.gmra.mrb[0].mxu0 %v756
        %v800 = vpop.f32.mrb[0].mxu0
        %v801 = vadd.f32 %v726, %v800
        %v802 = vpop.f32.mrb[0].mxu0
        %v803 = vpop.f32.mrb[0].mxu0
        %v804 = vpop.f32.mrb[0].mxu0
        %805 = vdwg.mxu0
        %806 = vst.msk [vmem:[%s362] sm:$0xff] %vm504, %v793
        %807 = vst.msk [vmem:[%s362 + $0x8] sm:$0xff] %vm504, %v796
        %808 = vst.msk [vmem:[%s362 + $0x10] sm:$0xff] %vm504, %v801
        %s809 = sand.u32 %s227, 1
        %s810 = sand.u32 %s227, 1
        %s811 = smul.addr %s810, 24
        %s812 = scalar_lea.vmem [#allocation2], %s811
        // Predicated region
        $region57: #{discriminator_forward.1} parent=55 // pred_check
          %p813 = pneg %p237
        $region58: #{discriminator_forward.1} parent=55 // pred_check_branch
          %815 = sbr.rel (%p813) target = $region60
        $region59: #{discriminator_forward.1} parent=55 // pred_region
          %s816 = smul.u32 3, %s20
          %s817 = ssub.s32 5, %s816
          %p818 = scmp.lt.s32.totalorder %s817, 3
          %s819 = scalar_select %p818, %s817, 3
          %s820 = smul.u32 128, %s819
          %p821 = scmp.ne.s32.totalorder 0, %s820
          %s822 = smul.addr %s816, 8
          %s823 = scalar_lea.vmem %s9, %s822
          // Predicated region
          $region61: #{discriminator_forward.1} parent=59 // pred_check
            %p824 = pneg %p821
          $region62: #{discriminator_forward.1} parent=59 // pred_check_branch
            %826 = sbr.rel (%p824) target = $region64
          $region63: #{discriminator_forward.1} parent=59 // pred_region
            // Predicated region
            $region65: #{discriminator_forward.1} parent=63 // pred_check
              _
            $region66: #{discriminator_forward.1} parent=63 // pred_check_branch
              %828 = sbr.rel (0) target = $region68
            $region67: #{discriminator_forward.1} parent=63 // pred_region
              // Predicated region
              $region87: #{discriminator_forward.1} parent=67 // pred_check
                _
              $region88: #{discriminator_forward.1} parent=67 // pred_check_branch
                %882 = sbr.rel (0) target = $region90
              $region89: #{discriminator_forward.1} parent=67 // pred_region
                %s883 = sdiv.u32.pop %s819, 3
                %s884 = srem.u32.pop %s819, 3
                // While loop
                $region91: #{discriminator_forward.1} parent=89 // loop_pre_header
                  _
                $region92: #{discriminator_forward.1} parent=89 // loop_header
                  %s886 = sphi 0, %s888
                  %p887 = scmp.ge.s32.totalorder %s886, %s883
                  %s891 = sphi 0, %s902
                  %s892 = sphi %s812, %s905
                  %s893 = sphi %s823, %s906
                $region93: #{discriminator_forward.1} parent=89 // loop_header_branch
                  %890 = sbr.rel (%p887) target = $region97
                $region94: #{discriminator_forward.1} parent=89 // loop_body
                  %v894 = vld [vmem:[%s892] sm:$0xff]
                  %895 = vst [vmem:[%s893] sm:$0xff] %v894
                  %v896 = vld [vmem:[%s892 + $0x8] sm:$0xff]
                  %897 = vst [vmem:[%s893 + $0x8] sm:$0xff] %v896
                  %v898 = vld [vmem:[%s892 + $0x10] sm:$0xff]
                  %899 = vst [vmem:[%s893 + $0x10] sm:$0xff] %v898
                  %s900 = sadd.s32 1, %s891
                  %p901 = scmp.ge.s32.totalorder %s900, %s883
                  %s902 = scalar_select %p901, 0, %s900
                  %s903 = smul.u32 %s902, 24
                  %s904 = smul.u32 %s902, 24
                  %s905 = scalar_lea.vmem %s812, %s903 [#allocation2]
                  %s906 = scalar_lea.vmem %s823, %s904
                $region95: #{discriminator_forward.1} parent=89 // loop_footer
                  %s888 = sadd.s32 %s886, 1
                $region96: #{discriminator_forward.1} parent=89 // loop_footer_branch
                  %885 = sbr.rel target = $region92
                $region97: #{discriminator_forward.1} parent=89 // loop_exit
                  _
                %s907 = sdiv.u32.pop %s819, 3
                %s908 = srem.u32.pop %s819, 3
                %s909 = smul.u32 %s907, 3
                %s910 = smul.u32 8, %s909
                %s911 = scalar_lea.vmem %s812, %s910 [#allocation2]
                %s912 = smul.u32 8, %s909
                %s913 = scalar_lea.vmem %s823, %s912
                // While loop
                $region98: #{discriminator_forward.1} parent=89 // loop_pre_header
                  _
                $region99: #{discriminator_forward.1} parent=89 // loop_header
                  %s915 = sphi 0, %s917
                  %p916 = scmp.ge.s32.totalorder %s915, %s908
                  %s920 = sphi 0, %s927
                  %s921 = sphi %s911, %s930
                  %s922 = sphi %s913, %s931
                $region100: #{discriminator_forward.1} parent=89 // loop_header_branch
                  %919 = sbr.rel (%p916) target = $region104
                $region101: #{discriminator_forward.1} parent=89 // loop_body
                  %v923 = vld [vmem:[%s921] sm:$0xff]
                  %924 = vst [vmem:[%s922] sm:$0xff] %v923
                  %s925 = sadd.s32 1, %s920
                  %p926 = scmp.ge.s32.totalorder %s925, %s908
                  %s927 = scalar_select %p926, 0, %s925
                  %s928 = smul.u32 %s927, 8
                  %s929 = smul.u32 %s927, 8
                  %s930 = scalar_lea.vmem %s911, %s928 [#allocation2]
                  %s931 = scalar_lea.vmem %s913, %s929
                $region102: #{discriminator_forward.1} parent=89 // loop_footer
                  %s917 = sadd.s32 %s915, 1
                $region103: #{discriminator_forward.1} parent=89 // loop_footer_branch
                  %914 = sbr.rel target = $region99
                $region104: #{discriminator_forward.1} parent=89 // loop_exit
                  _
              $region90: #{discriminator_forward.1} parent=67 // pred_fallthru
                _
              // Predicated region
              $region105: #{discriminator_forward.1} parent=67 // pred_check
                _
              $region106: #{discriminator_forward.1} parent=67 // pred_check_branch
                %933 = sbr.rel target = $region108
              $region107: #{discriminator_forward.1} parent=67 // pred_region
                _
              $region108: #{discriminator_forward.1} parent=67 // pred_fallthru
                _
            $region68: #{discriminator_forward.1} parent=63 // pred_fallthru
              _
            // Predicated region
            $region69: #{discriminator_forward.1} parent=63 // pred_check
              _
            $region70: #{discriminator_forward.1} parent=63 // pred_check_branch
              %830 = sbr.rel target = $region72
            $region71: #{discriminator_forward.1} parent=63 // pred_region
              %s832 = sdiv.u32.pop %s819, 3
              %s833 = srem.u32.pop %s819, 3
              // While loop
              $region73: #{discriminator_forward.1} parent=71 // loop_pre_header
                _
              $region74: #{discriminator_forward.1} parent=71 // loop_header
                %s835 = sphi 0, %s837
                %p836 = scmp.ge.s32.totalorder %s835, %s832
                %s840 = sphi 0, %s851
                %s841 = sphi %s812, %s854
                %s842 = sphi %s823, %s855
              $region75: #{discriminator_forward.1} parent=71 // loop_header_branch
                %839 = sbr.rel (%p836) target = $region79
              $region76: #{discriminator_forward.1} parent=71 // loop_body
                %v843 = vld [vmem:[%s841] sm:$0xff]
                %844 = vst [vmem:[%s842] sm:$0xff] %v843
                %v845 = vld [vmem:[%s841 + $0x8] sm:$0xff]
                %846 = vst [vmem:[%s842 + $0x8] sm:$0xff] %v845
                %v847 = vld [vmem:[%s841 + $0x10] sm:$0xff]
                %848 = vst [vmem:[%s842 + $0x10] sm:$0xff] %v847
                %s849 = sadd.s32 1, %s840
                %p850 = scmp.ge.s32.totalorder %s849, %s832
                %s851 = scalar_select %p850, 0, %s849
                %s852 = smul.u32 %s851, 24
                %s853 = smul.u32 %s851, 24
                %s854 = scalar_lea.vmem %s812, %s852 [#allocation2]
                %s855 = scalar_lea.vmem %s823, %s853
              $region77: #{discriminator_forward.1} parent=71 // loop_footer
                %s837 = sadd.s32 %s835, 1
              $region78: #{discriminator_forward.1} parent=71 // loop_footer_branch
                %834 = sbr.rel target = $region74
              $region79: #{discriminator_forward.1} parent=71 // loop_exit
                _
              %s856 = sdiv.u32.pop %s819, 3
              %s857 = srem.u32.pop %s819, 3
              %s858 = smul.u32 %s856, 3
              %s859 = smul.u32 8, %s858
              %s860 = scalar_lea.vmem %s812, %s859 [#allocation2]
              %s861 = smul.u32 8, %s858
              %s862 = scalar_lea.vmem %s823, %s861
              // While loop
              $region80: #{discriminator_forward.1} parent=71 // loop_pre_header
                _
              $region81: #{discriminator_forward.1} parent=71 // loop_header
                %s864 = sphi 0, %s866
                %p865 = scmp.ge.s32.totalorder %s864, %s857
                %s869 = sphi 0, %s876
                %s870 = sphi %s860, %s879
                %s871 = sphi %s862, %s880
              $region82: #{discriminator_forward.1} parent=71 // loop_header_branch
                %868 = sbr.rel (%p865) target = $region86
              $region83: #{discriminator_forward.1} parent=71 // loop_body
                %v872 = vld [vmem:[%s870] sm:$0xff]
                %873 = vst [vmem:[%s871] sm:$0xff] %v872
                %s874 = sadd.s32 1, %s869
                %p875 = scmp.ge.s32.totalorder %s874, %s857
                %s876 = scalar_select %p875, 0, %s874
                %s877 = smul.u32 %s876, 8
                %s878 = smul.u32 %s876, 8
                %s879 = scalar_lea.vmem %s860, %s877 [#allocation2]
                %s880 = scalar_lea.vmem %s862, %s878
              $region84: #{discriminator_forward.1} parent=71 // loop_footer
                %s866 = sadd.s32 %s864, 1
              $region85: #{discriminator_forward.1} parent=71 // loop_footer_branch
                %863 = sbr.rel target = $region81
              $region86: #{discriminator_forward.1} parent=71 // loop_exit
                _
            $region72: #{discriminator_forward.1} parent=63 // pred_fallthru
              _
          $region64: #{discriminator_forward.1} parent=59 // pred_fallthru
            _
          %934 = vnop
        $region60: #{discriminator_forward.1} parent=55 // pred_fallthru
          _
      $region56: #{discriminator_forward.1} parent=5 // pred_fallthru
        _
      %p935 = scmp.le.s32.totalorder 2, %s15
      // Predicated region
      $region109: #{discriminator_forward.1} parent=5 // pred_check
        %p936 = pneg %p935
      $region110: #{discriminator_forward.1} parent=5 // pred_check_branch
        %938 = sbr.rel (%p936) target = $region112
      $region111: #{discriminator_forward.1} parent=5 // pred_region
        %s939 = ssub.s32 %s15, 2
        // Predicated region
        $region113: #{discriminator_forward.1} parent=111 // pred_check
          %p940 = pneg %p243
        $region114: #{discriminator_forward.1} parent=111 // pred_check_branch
          %942 = sbr.rel (%p940) target = $region116
        $region115: #{discriminator_forward.1} parent=111 // pred_region
          %s943 = sand.u32 %s228, 1
          %s944 = sand.u32 %s228, 1
          %s945 = smul.addr %s944, 24
          %s946 = scalar_lea.vmem [#allocation2], %s945
        $region116: #{discriminator_forward.1} parent=111 // pred_fallthru
          _
      $region112: #{discriminator_forward.1} parent=5 // pred_fallthru
        _
    $region6: #{discriminator_forward.1} parent=1 // loop_footer
      %s19 = sadd.s32 1, %s15
    $region7: #{discriminator_forward.1} parent=1 // loop_footer_branch
      %14 = sbr.rel target = $region3
    $region8: #{discriminator_forward.1} parent=1 // loop_exit
      _

</llo_original>
